<compile_context>
chip_gen: v5e
topology: v5e:2x2
jax: 0.10.0
libtpu: 0.0.40
codegen_flags: <defaults>
</compile_context>

<pallas_src>
import functools

import jax
import jax.numpy as jnp
from jax.experimental import pallas as pl
from jax.experimental.pallas import tpu as pltpu


# ----------------------------------------------------------------------------
# Kernel
# ----------------------------------------------------------------------------
def _image_mix_kernel(lam_ref, x_ref, o_ref):
    """One grid step = one (B, TS, 128) sublane/lane-dense tile.

    lam_ref : SMEM f32 (1,)      -- effective mixup lambda (1.0 if not applied)
    x_ref   : VMEM (B, TS, 128)  -- batch tile; first dim spans the FULL batch
    o_ref   : VMEM (B, TS, 128)  -- mixed batch tile
    """
    lam = lam_ref[0]                  # f32 scalar, read once per step
    oml = 1.0 - lam                   # hoisted (1 - lambda)

    nb = x_ref.shape[0]               # static; full batch dim (roll correctness
                                      # requires the block to span all of B)

    # roll(1, axis=0) built from the VMEM-resident block (single HBM read).
    # Axis 0 is a major axis of the 3-D layout, so these static slices are
    # vreg-tile aligned.  Overlapping slices re-read rows from VMEM only.
    #   out[0]   = lam * x[0]   + (1 - lam) * x[B-1]      (wrap row)
    #   out[1:B] = lam * x[1:B] + (1 - lam) * x[0:B-1]
    row0 = (lam * x_ref[0:1, :, :].astype(jnp.float32)
            + oml * x_ref[nb - 1:nb, :, :].astype(jnp.float32))
    o_ref[0:1, :, :] = row0.astype(o_ref.dtype)

    if nb > 1:                        # static; skipped entirely when B == 1
        rest = (lam * x_ref[1:nb, :, :].astype(jnp.float32)
                + oml * x_ref[0:nb - 1, :, :].astype(jnp.float32))
        o_ref[1:nb, :, :] = rest.astype(o_ref.dtype)


# ----------------------------------------------------------------------------
# Tiling helper
# ----------------------------------------------------------------------------
def _choose_sublane_tile(s, b, itemsize, vmem_budget_bytes=16 * 1024 * 1024):
    """Sublane tile TS for (B, TS, 128) blocks.

    TS is a multiple of 8 (or the full extent S), sized so the ~4 live buffers
    (in + out, each double-buffered) fit `vmem_budget_bytes`.  No divides-S
    requirement: the grid uses cdiv and a ragged last block is fine.
    """
    ts_max = vmem_budget_bytes // (4 * b * 128 * itemsize)
    ts_max = max(8, (ts_max // 8) * 8)
    if s <= ts_max:
        if s < 16:
            return s                      # single full-extent block
        # Fits in one block, but split into (at least) 2 grid steps so the
        # "parallel" axis can shard across v7x's two TensorCores.
        half = -(-s // 2)
        return min(ts_max, -(-half // 8) * 8)
    return ts_max


# ----------------------------------------------------------------------------
# Wrapper (JAX glue: RNG draws, padding/reshapes, tiny one-hot mix)
# ----------------------------------------------------------------------------
def random_mixup(key, batch, target, *, num_classes, p=0.5, alpha=1.0):
    """JAX/Pallas equivalent of RandomMixUp.forward.

    batch : float (B, C, H, W)
    target: int (B,)
    returns (mixed_batch (B, C, H, W), mixed_onehot_target (B, num_classes))
    """
    if num_classes < 1:
        raise ValueError(f"Please provide a valid positive value for num_classes. Got {num_classes}")
    if alpha <= 0:
        raise ValueError("Alpha param can't be zero.")
    if batch.ndim != 4:
        raise ValueError(f"Batch ndim should be 4. Got {batch.ndim}")
    if target.ndim != 1:
        raise ValueError(f"Target ndim should be 1. Got {target.ndim}")

    B, C, H, W = batch.shape
    D = C * H * W
    itemsize = jnp.dtype(batch.dtype).itemsize

    # --- randomness (no Pallas equivalent; drawn with jax.random) ---
    k_p, k_lam = jax.random.split(key)
    u = jax.random.uniform(k_p)
    lam = jax.random.beta(k_lam, alpha, alpha)
    apply_mix = u < p
    lam_eff = jnp.where(apply_mix, lam, 1.0).astype(jnp.float32)   # f32 scalar
    lam_vec = lam_eff.reshape(1)

    # --------------------------- image mix kernel ---------------------------
    # Lane/sublane-dense 3-D view: (B, S, 128), S = ceil(D / 128).
    d_pad = -(-D // 128) * 128
    x2d = batch.reshape(B, D)
    if d_pad != D:
        x2d = jnp.pad(x2d, ((0, 0), (0, d_pad - D)))
    S = d_pad // 128
    x3d = x2d.reshape(B, S, 128)

    TS = _choose_sublane_tile(S, B, itemsize)
    grid = (pl.cdiv(S, TS),)

    cost = pl.CostEstimate(
        flops=3 * B * d_pad,                            # 2 mul + 1 add / element
        transcendentals=0,
        bytes_accessed=2 * B * d_pad * itemsize + 4,    # one read + one write
    )

    mixed3d = pl.pallas_call(
        _image_mix_kernel,
        grid_spec=pltpu.PrefetchScalarGridSpec(
            num_scalar_prefetch=0,
            grid=grid,
            in_specs=[
                pl.BlockSpec(memory_space=pltpu.MemorySpace.SMEM),   # lam (1,)
                pl.BlockSpec((B, TS, 128), lambda j: (0, j, 0)),     # batch tile
            ],
            out_specs=pl.BlockSpec((B, TS, 128), lambda j: (0, j, 0)),
        ),
        out_shape=jax.ShapeDtypeStruct((B, S, 128), batch.dtype),
        compiler_params=pltpu.CompilerParams(
            dimension_semantics=("parallel",),          # v7x: shard over 2 TCs
            vmem_limit_bytes=32 * 1024 * 1024,          # safe on v5e/v6e/v7x
        ),
        cost_estimate=cost,
        input_output_aliases={1: 0},                    # mixed batch reuses input HBM
    )(lam_vec, x3d)

    mixed = mixed3d.reshape(B, d_pad)[:, :D].reshape(B, C, H, W)

    # ------------------------- target one-hot mix ---------------------------
    # O(B * num_classes) elements: plain JAX (single tiny XLA fusion).  A
    # dedicated pallas_call launch costs more than the work it would do.
    onehot = jax.nn.one_hot(target, num_classes, dtype=jnp.float32)
    onehot_rolled = jnp.roll(onehot, 1, axis=0)
    mixed_target = (lam_eff * onehot + (1.0 - lam_eff) * onehot_rolled).astype(batch.dtype)

    return mixed, mixed_target


# ----------------------------------------------------------------------------
# Pure-JAX reference (same RNG draws as random_mixup)
# ----------------------------------------------------------------------------
def _reference(key, batch, target, *, num_classes, p, alpha):
    k_p, k_lam = jax.random.split(key)
    u = jax.random.uniform(k_p)
    lam = jax.random.beta(k_lam, alpha, alpha)
    lam_eff = jnp.where(u < p, lam, 1.0).astype(jnp.float32)

    onehot = jax.nn.one_hot(target, num_classes, dtype=batch.dtype)
    batch_rolled = jnp.roll(batch, 1, axis=0)
    onehot_rolled = jnp.roll(onehot, 1, axis=0)
    out_b = (lam_eff * batch + (1.0 - lam_eff) * batch_rolled).astype(batch.dtype)
    out_t = (lam_eff * onehot + (1.0 - lam_eff) * onehot_rolled).astype(batch.dtype)
    return out_b, out_t


if __name__ == "__main__":
    num_classes = 10
    p = 0.5
    alpha = 1.0

    key = jax.random.PRNGKey(0)
    k_data, k_tgt, k_mix = jax.random.split(key, 3)

    B, C, H, W = 2, 4, 16, 16
    batch = jax.random.normal(k_data, (B, C, H, W), dtype=jnp.float32)
    target = jax.random.randint(k_tgt, (B,), 0, num_classes, dtype=jnp.int32)

    fn = functools.partial(random_mixup, num_classes=num_classes, p=p, alpha=alpha)
    out_batch, out_target = jax.jit(fn)(k_mix, batch, target)
    jax.block_until_ready((out_batch, out_target))

    ref_batch, ref_target = _reference(
        k_mix, batch, target, num_classes=num_classes, p=p, alpha=alpha
    )
    assert out_batch.shape == (B, C, H, W)
    assert out_target.shape == (B, num_classes)
    assert jnp.allclose(out_batch, ref_batch, atol=1e-5, rtol=1e-5)
    assert jnp.allclose(out_target, ref_target, atol=1e-5, rtol=1e-5)

    print("KERNEL_OK")
</pallas_src>

<mosaic_0001>
module attributes {stable_mosaic.version = 11 : i64} {
  func.func @_image_mix_kernel(%arg0: i32, %arg1: memref<1xf32, #tpu.memory_space<smem>>, %arg2: memref<2x8x128xf32, #tpu.memory_space<vmem>>, %arg3: memref<2x8x128xf32, #tpu.memory_space<vmem>>) attributes {dimension_semantics = [#tpu.dimension_semantics<parallel>], iteration_bounds = array<i64: 1>, scalar_prefetch = 0 : i64, scratch_operands = 0 : i64, tpu.core_type = #tpu.core_type<tc>, window_params = [{transform_indices = @transform_0, window_bounds = array<i64: 1>}, {transform_indices = @transform_1, window_bounds = array<i64: 2, 8, 128>}, {transform_indices = @transform_2, window_bounds = array<i64: 2, 8, 128>}]} {
    %c0 = arith.constant 0 : index
    %0 = memref.load %arg1[%c0] : memref<1xf32, #tpu.memory_space<smem>>
    %cst = arith.constant 1.000000e+00 : f32
    %1 = arith.subf %cst, %0 : f32
    %c0_0 = arith.constant 0 : index
    %c0_1 = arith.constant 0 : index
    %c0_2 = arith.constant 0 : index
    %2 = vector.load %arg2[%c0_0, %c0_1, %c0_2] : memref<2x8x128xf32, #tpu.memory_space<vmem>>, vector<1x8x128xf32>
    %3 = vector.broadcast %0 : f32 to vector<1x8x128xf32>
    %4 = arith.mulf %3, %2 : vector<1x8x128xf32>
    %c1 = arith.constant 1 : index
    %c0_3 = arith.constant 0 : index
    %c0_4 = arith.constant 0 : index
    %5 = vector.load %arg2[%c1, %c0_3, %c0_4] : memref<2x8x128xf32, #tpu.memory_space<vmem>>, vector<1x8x128xf32>
    %6 = vector.broadcast %1 : f32 to vector<1x8x128xf32>
    %7 = arith.mulf %6, %5 : vector<1x8x128xf32>
    %8 = arith.addf %4, %7 : vector<1x8x128xf32>
    %c0_5 = arith.constant 0 : index
    %c0_6 = arith.constant 0 : index
    %c0_7 = arith.constant 0 : index
    %9 = vector.load %arg3[%c0_5, %c0_6, %c0_7] : memref<2x8x128xf32, #tpu.memory_space<vmem>>, vector<1x8x128xf32>
    tpu.vector_store %arg3[%c0_5, %c0_6, %c0_7], %8 {strides = array<i32>} : memref<2x8x128xf32, #tpu.memory_space<vmem>>, vector<1x8x128xf32>,
    %c1_8 = arith.constant 1 : index
    %c0_9 = arith.constant 0 : index
    %c0_10 = arith.constant 0 : index
    %10 = vector.load %arg2[%c1_8, %c0_9, %c0_10] : memref<2x8x128xf32, #tpu.memory_space<vmem>>, vector<1x8x128xf32>
    %11 = vector.broadcast %0 : f32 to vector<1x8x128xf32>
    %12 = arith.mulf %11, %10 : vector<1x8x128xf32>
    %c0_11 = arith.constant 0 : index
    %c0_12 = arith.constant 0 : index
    %c0_13 = arith.constant 0 : index
    %13 = vector.load %arg2[%c0_11, %c0_12, %c0_13] : memref<2x8x128xf32, #tpu.memory_space<vmem>>, vector<1x8x128xf32>
    %14 = vector.broadcast %1 : f32 to vector<1x8x128xf32>
    %15 = arith.mulf %14, %13 : vector<1x8x128xf32>
    %16 = arith.addf %12, %15 : vector<1x8x128xf32>
    %c1_14 = arith.constant 1 : index
    %c0_15 = arith.constant 0 : index
    %c0_16 = arith.constant 0 : index
    %17 = vector.load %arg3[%c1_14, %c0_15, %c0_16] : memref<2x8x128xf32, #tpu.memory_space<vmem>>, vector<1x8x128xf32>
    tpu.vector_store %arg3[%c1_14, %c0_15, %c0_16], %16 {strides = array<i32>} : memref<2x8x128xf32, #tpu.memory_space<vmem>>, vector<1x8x128xf32>,
    return
  }
  func.func @transform_0(%arg0: i32) -> i32 {
    %c0_i32 = arith.constant 0 : i32
    %c0_i32_0 = arith.constant 0 : i32
    return %c0_i32 : i32
  }
  func.func @transform_1(%arg0: i32) -> (i32, i32, i32) {
    %c0_i32 = arith.constant 0 : i32
    %c0_i32_0 = arith.constant 0 : i32
    %c0_i32_1 = arith.constant 0 : i32
    return %c0_i32, %arg0, %c0_i32_0 : i32, i32, i32
  }
  func.func @transform_2(%arg0: i32) -> (i32, i32, i32) {
    %c0_i32 = arith.constant 0 : i32
    %c0_i32_0 = arith.constant 0 : i32
    %c0_i32_1 = arith.constant 0 : i32
    return %c0_i32, %arg0, %c0_i32_0 : i32, i32, i32
  }
}

</mosaic_0001>

<llo_original>
// kernel: random_mixup.1
$region0: #{random_mixup.1}
  #allocation0 [shape = 'u32[]', space=smem, size = 0x4, offset = 0x4, fixed_abs, tag = 'smem constant byte address 0x4 - core index']
  #allocation1 [shape = 'u32[72,128]{1,0:T(1,128)}', space=vmem, size = 0x9000, scoped, tag = 'internal scratch']
  #allocation2 [shape = 'f32[1]{0:T(128)S(6)}', space=smem, size = 0x200, scoped, tag = 'scoped memory for random_mixup.1']
  %s0 = inlined_call_operand.<no memory space> [shape: f32[1], index: 0, kind: input, shape index: {}]
  %s1 = inlined_call_operand.vmem [shape: f32[2,8,128], index: 1, kind: input, shape index: {}, may-alias: {1,2}]
  %s2 = inlined_call_operand.vmem [shape: f32[2,8,128], index: 2, kind: output, shape index: {}, may-alias: {1,2}]
  %s3 = sld [smem:[#allocation0]]
  $region18: #{random_mixup.1} parent=0
    _
  %s5 = ssub.s32 1, %s3
  %s6 = scalar_select 0, %s5, %s3
  %7 = sst [smem:[#allocation2]] %s0
  // Predicated region
  $region2: #{random_mixup.1} parent=0 // pred_check
    _
  $region3: #{random_mixup.1} parent=0 // pred_check_branch
    %9 = sbr.rel (0) target = $region5
  $region4: #{random_mixup.1} parent=0 // pred_region
    _
  $region5: #{random_mixup.1} parent=0 // pred_fallthru
    _
  // Predicated region
  $region6: #{random_mixup.1} parent=0 // pred_check
    _
  $region7: #{random_mixup.1} parent=0 // pred_check_branch
    %11 = sbr.rel (0) target = $region9
  $region8: #{random_mixup.1} parent=0 // pred_region
    _
  $region9: #{random_mixup.1} parent=0 // pred_fallthru
    _
  %s12 = sld [smem:[#allocation2]]
  %s13 = ssub.f32 1.0, %s12
  %v14 = vld [vmem:[%s1] sm:$0xff]
  %v15 = vstv %s12
  %v16 = vmul.f32 %v15, %v14
  %s17 = scalar_lea.vmem %s1, 8
  %v18 = vld [vmem:[%s17] sm:$0xff]
  %v19 = vstv %s13
  %v20 = vmul.f32 %v19, %v18
  %v21 = vadd.f32 %v16, %v20
  %22 = vst [vmem:[%s2] sm:$0xff] %v21
  %v23 = vld [vmem:[%s17] sm:$0xff]
  %v24 = vmul.f32 %v15, %v23
  %v25 = vld [vmem:[%s1] sm:$0xff]
  %v26 = vmul.f32 %v19, %v25
  %v27 = vadd.f32 %v24, %v26
  %s28 = scalar_lea.vmem %s2, 8
  %29 = vst [vmem:[%s28] sm:$0xff] %v27
  // Predicated region
  $region10: #{random_mixup.1} parent=0 // pred_check
    _
  $region11: #{random_mixup.1} parent=0 // pred_check_branch
    %31 = sbr.rel (0) target = $region13
  $region12: #{random_mixup.1} parent=0 // pred_region
    _
  $region13: #{random_mixup.1} parent=0 // pred_fallthru
    _
  // Predicated region
  $region14: #{random_mixup.1} parent=0 // pred_check
    _
  $region15: #{random_mixup.1} parent=0 // pred_check_branch
    %33 = sbr.rel (0) target = $region17
  $region16: #{random_mixup.1} parent=0 // pred_region
    _
  $region17: #{random_mixup.1} parent=0 // pred_fallthru
    _

</llo_original>
